<compile_context>
chip_gen: v7x
topology: tpu7x:2x2x1
jax: 0.10.0
libtpu: 0.0.40
codegen_flags: <defaults>
</compile_context>

<pallas_src>
import functools

import jax
import jax.numpy as jnp
from jax import lax
from jax.experimental import pallas as pl
from jax.experimental.pallas import tpu as pltpu

_MB = 1024 * 1024


def _round_up(x: int, m: int) -> int:
    return (x + m - 1) // m * m


# --------------------------------------------------------------------- kernel 1
def _normalize_kernel(x_ref, xn_ref, *, scale):
    """L2-normalize one row tile (f32 math, EUP rsqrt); fold sqrt(1/T) into the rows."""
    x = x_ref[...].astype(jnp.float32)                       # [T, D]
    sumsq = jnp.sum(x * x, axis=1, keepdims=True)            # [T, 1]
    # F.normalize(p=2, eps=1e-12): x / max(||x||, eps) == x * rsqrt(max(||x||^2, eps^2)).
    # `scale` = sqrt(1/temperature) folds the similarity scaling into the operands so
    # kernel 2 needs no per-element multiply in its inner loop.
    inv = lax.rsqrt(jnp.maximum(sumsq, 1e-24)) * scale
    xn_ref[...] = (x * inv).astype(xn_ref.dtype)


# --------------------------------------------------------------------- kernel 2
def _accumulate_tile(lhs, rhs, o_ref, i, j):
    """Accumulate exp-similarity column sums of one [tile, tile] tile into o_ref."""
    # sim[a, b] = <xn[j*tile+a], xn[i*tile+b]>  (1/T already folded into xn).
    # Contracting the last dims of both operands avoids any materialized transpose
    # (same MXU pattern as flash attention's q @ k.T).
    sim = lax.dot_general(lhs, rhs, (((1,), (1,)), ((), ())),
                          preferred_element_type=jnp.float32)
    e = jnp.exp(sim)                                          # [tile, tile] f32 (EUP)
    # Sublane reduction -> lane-dense [1, tile]; sim is symmetric so these column sums
    # are exactly the row sums for output block i.
    o_ref[...] += jnp.sum(e, axis=0, keepdims=True).reshape(o_ref.shape)

    @pl.when(i == j)
    def _():
        # Diagonal tile: replace the un-masked diagonal term exp(sim[r, r]) by the
        # masked exp(0) = 1.  Using the very `e` values computed above makes the
        # cancellation exact (robust to bf16 operands and all-zero padded rows).
        r = lax.broadcasted_iota(jnp.int32, e.shape, 0)
        c = lax.broadcasted_iota(jnp.int32, e.shape, 1)
        diag = jnp.sum(jnp.where(r == c, e, 0.0), axis=0, keepdims=True)   # [1, tile]
        o_ref[...] += (1.0 - diag).reshape(o_ref.shape)


def _rowsum_resident_kernel(x_ref, o_ref, *, tile):
    """xn fully resident in VMEM (single DMA): slice both operand tiles on-chip."""
    i, j = pl.program_id(0), pl.program_id(1)

    @pl.when(j == 0)
    def _():
        o_ref[...] = jnp.zeros_like(o_ref)

    lhs = x_ref[pl.ds(pl.multiple_of(j * tile, 8), tile), :]
    rhs = x_ref[pl.ds(pl.multiple_of(i * tile, 8), tile), :]
    _accumulate_tile(lhs, rhs, o_ref, i, j)


def _rowsum_streamed_kernel(lhs_ref, rhs_ref, o_ref):
    """xn too large for VMEM residency: stream the reduction (j) blocks from HBM."""
    i, j = pl.program_id(0), pl.program_id(1)

    @pl.when(j == 0)
    def _():
        o_ref[...] = jnp.zeros_like(o_ref)

    _accumulate_tile(lhs_ref[...], rhs_ref[...], o_ref, i, j)


# --------------------------------------------------------------------- wrapper
def regularization_loss(embeddings: jax.Array,
                        temperature: float = 0.5,
                        *,
                        tile: int = None,
                        use_bf16_matmul: bool = True,
                        residency_threshold_bytes: int = 8 * _MB) -> jax.Array:
    """embeddings: [batch_size, embedding_dim] -> scalar loss (float32)."""
    B, D = embeddings.shape
    b8 = _round_up(B, 8)

    # bf16 MXU operands by default (f32 accumulation everywhere): native MXU dtype on
    # v5e/v6e/v7x and half the streamed HBM bytes.  use_bf16_matmul=False for ~f32 accuracy.
    mm_dtype = jnp.bfloat16 if use_bf16_matmul else jnp.float32
    mm_item = jnp.dtype(mm_dtype).itemsize
    in_item = jnp.dtype(embeddings.dtype).itemsize

    # ---- kernel-2 tile selection.  Keep >= 2 output blocks whenever B allows so the
    # "parallel" grid axis can be sharded over both v7x TensorCores; use larger tiles
    # when xn must be streamed (fewer passes over it).
    if tile is None:
        if b8 <= 128:
            tile = b8                               # single full-extent block
        elif b8 <= 256:
            tile = 128
        elif b8 <= 1024:
            tile = 256
        else:
            streamed_guess = b8 * D * mm_item > residency_threshold_bytes
            tile = 512 if (streamed_guess and D * mm_item <= 4096) else 256
    else:
        tile = b8 if b8 <= tile else max(128, _round_up(tile, 128))

    B_pad = _round_up(B, tile)
    resident = B_pad * D * mm_item <= residency_threshold_bytes
    if not resident:
        # Shrink the streamed tile until double-buffered (tile, D) operand blocks plus
        # the f32 exp tile fit comfortably in every generation's VMEM (v7x: 64 MiB).
        while tile > 128 and (4 * tile * D * mm_item + 3 * tile * tile * 4) > 40 * _MB:
            tile //= 2
        B_pad = _round_up(B, tile)
    n_blk = B_pad // tile

    x = embeddings
    if B_pad != B:
        # Zero rows normalize to 0 -> each padded column contributes exp(0)=1 to every
        # real row sum; corrected exactly in the O(B) finalization below.
        x = jnp.pad(x, ((0, B_pad - B), (0, 0)))

    # ---- kernel 1: L2 normalization (row-tiled; tile decoupled from kernel 2 and
    # grown toward the HBM roofline within a modest VMEM budget).
    tile1 = tile
    for d in range(1, n_blk + 1):
        if n_blk % d == 0:
            t1 = tile * d
            if t1 <= 2048 and t1 * D * (2 * (in_item + mm_item) + 8) <= 24 * _MB:
                tile1 = t1
    vmem1 = int(min(max(32 * _MB,
                        tile1 * D * (2 * (in_item + mm_item) + 8) + 2 * _MB), 48 * _MB))
    scale = float(temperature) ** -0.5              # sqrt(1/T) folded into the rows
    xn = pl.pallas_call(
        functools.partial(_normalize_kernel, scale=scale),
        out_shape=jax.ShapeDtypeStruct((B_pad, D), mm_dtype),
        grid=(B_pad // tile1,),
        in_specs=[pl.BlockSpec((tile1, D), lambda i: (i, 0))],
        out_specs=pl.BlockSpec((tile1, D), lambda i: (i, 0)),
        compiler_params=pltpu.CompilerParams(
            dimension_semantics=("parallel",), vmem_limit_bytes=vmem1),
    )(x)

    # ---- kernel 2: tiled exp-similarity row sums (flash-style accumulation).
    out_shape = jax.ShapeDtypeStruct((n_blk, 1, tile), jnp.float32)
    out_spec = pl.BlockSpec((1, 1, tile), lambda i, j: (i, 0, 0))
    grid = (n_blk, n_blk)         # (output block i: parallel, reduction block j: arbitrary)
    flops = 2 * B_pad * B_pad * D
    trans = B_pad * B_pad
    out_bytes = 2 * n_blk * tile * 4
    sem = pltpu.CompilerParams  # alias for brevity

    if resident:
        vmem2 = int(min(max(32 * _MB,
                            2 * B_pad * D * mm_item + 3 * tile * tile * 4
                            + out_bytes + 2 * _MB), 48 * _MB))
        col_sums = pl.pallas_call(
            functools.partial(_rowsum_resident_kernel, tile=tile),
            out_shape=out_shape,
            grid=grid,
            in_specs=[pl.BlockSpec((B_pad, D), lambda i, j: (0, 0))],   # single DMA, resident
            out_specs=out_spec,
            compiler_params=sem(dimension_semantics=("parallel", "arbitrary"),
                                vmem_limit_bytes=vmem2),
            cost_estimate=pl.CostEstimate(
                flops=flops, transcendentals=trans,
                bytes_accessed=B_pad * D * mm_item + B_pad * 4),
        )(xn)
    else:
        vmem2 = int(min(max(32 * _MB,
                            4 * tile * D * mm_item + 3 * tile * tile * 4
                            + out_bytes + 2 * _MB), 48 * _MB))
        # If xprof ever shows exposed per-j DMA here, sweep pipeline_mode=pl.Buffered(3)
        # on the streamed (j) spec.
        col_sums = pl.pallas_call(
            _rowsum_streamed_kernel,
            out_shape=out_shape,
            grid=grid,
            in_specs=[pl.BlockSpec((tile, D), lambda i, j: (j, 0)),   # streamed reduction rows
                      pl.BlockSpec((tile, D), lambda i, j: (i, 0))],  # per-i rows (resident over j)
            out_specs=out_spec,
            compiler_params=sem(dimension_semantics=("parallel", "arbitrary"),
                                vmem_limit_bytes=vmem2),
            cost_estimate=pl.CostEstimate(
                flops=flops, transcendentals=trans,
                bytes_accessed=(n_blk + 1) * B_pad * D * mm_item + B_pad * 4),
        )(xn, xn)

    # ---- tiny O(B) finalization in plain JAX.
    # Kernel row sums already have the diagonal replaced by the masked exp(0)=1; drop the
    # exp(0)=1 contribution of every zero-padded column and the padded rows themselves.
    sums = col_sums.reshape(B_pad)[:B] - float(B_pad - B)
    total = jnp.sum(sums)
    # -mean(log(sums / total)) == log(total) - mean(log(sums))   (no per-row divide)
    return jnp.log(total) - jnp.mean(jnp.log(sums))


# ------------------------------------------------------------------------ tests
def _reference(embeddings: jax.Array, temperature: float = 0.5) -> jax.Array:
    x = embeddings.astype(jnp.float32)
    xn = x / jnp.maximum(jnp.linalg.norm(x, axis=1, keepdims=True), 1e-12)
    sim = jnp.matmul(xn, xn.T, precision=jax.lax.Precision.HIGHEST) / temperature
    b = x.shape[0]
    masked = sim * (jnp.ones((b, b)) - jnp.eye(b))
    exp_sim = jnp.exp(masked)
    return -jnp.mean(jnp.log(exp_sim.sum(axis=1) / exp_sim.sum()))


if __name__ == "__main__":
    key = jax.random.PRNGKey(0)
    k1, k2, k3, k4 = jax.random.split(key, 4)

    # 1) small single-block case, f32 MXU path (tight check).
    emb = jax.random.normal(k1, (8, 32), dtype=jnp.float32)
    loss = regularization_loss(emb, 0.5, use_bf16_matmul=False)
    jax.block_until_ready(loss)
    ref = _reference(emb, 0.5)
    assert jnp.allclose(loss, ref, atol=1e-4, rtol=1e-4), (loss, ref)

    # 2) batch not a multiple of 8 (padding path).
    emb2 = jax.random.normal(k2, (20, 32), dtype=jnp.float32)
    loss2 = regularization_loss(emb2, 0.5, use_bf16_matmul=False)
    ref2 = _reference(emb2, 0.5)
    assert jnp.allclose(loss2, ref2, atol=1e-4, rtol=1e-4), (loss2, ref2)

    # 3) multi-tile resident path (2x2 grid of 128x128 tiles): bf16 default and f32.
    emb3 = jax.random.normal(k3, (256, 32), dtype=jnp.float32)
    ref3 = _reference(emb3, 0.5)
    loss3_bf16 = regularization_loss(emb3, 0.5)                      # bf16 MXU default
    jax.block_until_ready(loss3_bf16)
    assert jnp.allclose(loss3_bf16, ref3, atol=3e-2, rtol=3e-2), (loss3_bf16, ref3)
    loss3_f32 = regularization_loss(emb3, 0.5, use_bf16_matmul=False)
    assert jnp.allclose(loss3_f32, ref3, atol=1e-4, rtol=1e-4), (loss3_f32, ref3)

    # 4) padded multi-tile case (300 rows -> 512 padded, 2x2 grid of 256x256 tiles).
    emb4 = jax.random.normal(k4, (300, 32), dtype=jnp.float32)
    ref4 = _reference(emb4, 0.5)
    loss4 = regularization_loss(emb4, 0.5, use_bf16_matmul=False)
    assert jnp.allclose(loss4, ref4, atol=1e-4, rtol=1e-4), (loss4, ref4)

    # 5) force the streamed (non-resident) kernel-2 path at a small shape.
    loss5 = regularization_loss(emb3, 0.5, use_bf16_matmul=False,
                                residency_threshold_bytes=0)
    assert jnp.allclose(loss5, ref3, atol=1e-4, rtol=1e-4), (loss5, ref3)

    print("KERNEL_OK")
</pallas_src>

<mosaic_0001>
module attributes {stable_mosaic.version = 11 : i64} {
  func.func @_normalize_kernel(%arg0: i32, %arg1: memref<8x32xf32, #tpu.memory_space<vmem>>, %arg2: memref<8x32xf32, #tpu.memory_space<vmem>>) attributes {dimension_semantics = [#tpu.dimension_semantics<parallel>], iteration_bounds = array<i64: 1>, scalar_prefetch = 0 : i64, scratch_operands = 0 : i64, tpu.core_type = #tpu.core_type<tc>, window_params = [{transform_indices = @transform_0, window_bounds = array<i64: 8, 32>}, {transform_indices = @transform_1, window_bounds = array<i64: 8, 32>}]} {
    %c0 = arith.constant 0 : index
    %c0_0 = arith.constant 0 : index
    %0 = vector.load %arg1[%c0, %c0_0] : memref<8x32xf32, #tpu.memory_space<vmem>>, vector<8x32xf32>
    %1 = arith.mulf %0, %0 : vector<8x32xf32>
    %cst = arith.constant dense<0.000000e+00> : vector<8xf32>
    %2 = vector.multi_reduction <add>, %1, %cst [1] : vector<8x32xf32> to vector<8xf32>
    %3 = vector.shape_cast %2 : vector<8xf32> to vector<8x1xf32>
    %cst_1 = arith.constant 1.000000e-24 : f32
    %4 = vector.broadcast %cst_1 : f32 to vector<8x1xf32>
    %5 = arith.maximumf %3, %4 : vector<8x1xf32>
    %6 = math.rsqrt %5 : vector<8x1xf32>
    %cst_2 = arith.constant 1.41421354 : f32
    %7 = vector.broadcast %cst_2 : f32 to vector<8x1xf32>
    %8 = arith.mulf %6, %7 : vector<8x1xf32>
    %9 = vector.broadcast %8 : vector<8x1xf32> to vector<8x32xf32>
    %10 = arith.mulf %0, %9 : vector<8x32xf32>
    %c0_3 = arith.constant 0 : index
    %c0_4 = arith.constant 0 : index
    %11 = vector.load %arg2[%c0_3, %c0_4] : memref<8x32xf32, #tpu.memory_space<vmem>>, vector<8x32xf32>
    tpu.vector_store %arg2[%c0_3, %c0_4], %10 {strides = array<i32>} : memref<8x32xf32, #tpu.memory_space<vmem>>, vector<8x32xf32>,
    return
  }
  func.func @transform_0(%arg0: i32) -> (i32, i32) {
    %c0_i32 = arith.constant 0 : i32
    %c0_i32_0 = arith.constant 0 : i32
    return %arg0, %c0_i32 : i32, i32
  }
  func.func @transform_1(%arg0: i32) -> (i32, i32) {
    %c0_i32 = arith.constant 0 : i32
    %c0_i32_0 = arith.constant 0 : i32
    return %arg0, %c0_i32 : i32, i32
  }
}

</mosaic_0001>

<llo_original>
// kernel: tpu_custom_call.1
$region0: #{tpu_custom_call.1}
  #allocation0 [shape = 'u32[]', space=smem, size = 0x4, offset = 0x4, fixed_abs, tag = 'smem constant byte address 0x4 - core index']
  #allocation1 [shape = 'u32[144,128]{1,0:T(1,128)}', space=vmem, size = 0x12000, scoped, tag = 'internal scratch']
  %s0 = inlined_call_operand.hbm [shape: f32[8,32], index: 0, kind: input, shape index: {}]
  %s1 = inlined_call_operand.hbm [shape: f32[8,32], index: 1, kind: output, shape index: {}]
  %s2 = sld [smem:[#allocation0]]
  $region18: #{tpu_custom_call.1} parent=0
    _
  %s4 = ssub.s32 1, %s2
  %s5 = scalar_select 0, %s4, %s2
  $region1: #{tpu_custom_call.1} parent=0
    #allocation2 [shape = 'u8[4096]{0}', space=vmem, size = 0x1000, scoped, tag = 'input window, operand 0, single buffered']
    #allocation3 [shape = 's32[1]{0}', space=sflag, size = 0x4, scoped, tag = 'scoped memory for tpu_custom_call.1']
    #allocation4 [shape = 's32[1]{0}', space=sflag, size = 0x4, scoped, tag = 'scoped memory for tpu_custom_call.1']
    #allocation5 [shape = 'u8[4096]{0}', space=vmem, size = 0x1000, scoped, tag = 'output window, operand 0, single buffered']
    %6 = vsyncpa [#allocation3], 0
    %7 = vsyncpa [#allocation4], 0
    // Predicated region
    $region2: #{tpu_custom_call.1} parent=1 // pred_check
      _
    $region3: #{tpu_custom_call.1} parent=1 // pred_check_branch
      %9 = sbr.rel (0) target = $region5
    $region4: #{tpu_custom_call.1} parent=1 // pred_region
      %s11 = ssub.s32 128, 128
      %12 = vsyncadd [#allocation3], %s11
      %s14 = sshll.u32 [#allocation2], 4
      %s15 = int_to_ptr.vmem [resolvable:$true] %s14
      %17 = dma.hbm_to_vmem [thread:$0]  %s0, 128, %s15, [#allocation3]
    $region5: #{tpu_custom_call.1} parent=1 // pred_fallthru
      _
    // Predicated region
    $region6: #{tpu_custom_call.1} parent=1 // pred_check
      _
    $region7: #{tpu_custom_call.1} parent=1 // pred_check_branch
      %19 = sbr.rel (0) target = $region9
    $region8: #{tpu_custom_call.1} parent=1 // pred_region
      %20 = dma.done [#allocation3], 128
    $region9: #{tpu_custom_call.1} parent=1 // pred_fallthru
      _
    %v21 = vld [vmem:[#allocation2] sm:$0xff]
    %v22 = vmul.f32 %v21, %v21
    %vm23 = vcmask 261120
    %v24 = vsel %vm23, %v22, 0.0
    %25 = vadd.xlane.f32.xlu0 %v24
    %v26 = vpop.xlane.xlu0 %25
    %v27 = vmax.f32 %v26, 1e-24
    %v28 = vrsqrt.pop %v27
    %v29 = vmul.f32 %v28, 1.4142135
    %v30 = vmul.f32 %v21, %v29
    %31 = vst.msk [vmem:[#allocation5] sm:$0xff] %vm23, %v30
    // Predicated region
    $region10: #{tpu_custom_call.1} parent=1 // pred_check
      _
    $region11: #{tpu_custom_call.1} parent=1 // pred_check_branch
      %33 = sbr.rel (0) target = $region13
    $region12: #{tpu_custom_call.1} parent=1 // pred_region
      %s35 = ssub.s32 128, 128
      %36 = vsyncadd [#allocation4], %s35
      %s38 = sshll.u32 [#allocation5], 4
      %s39 = int_to_ptr.vmem [resolvable:$true] %s38
      %41 = dma.vmem_to_hbm [thread:$0]  %s39, 128, %s1, [#allocation4]
    $region13: #{tpu_custom_call.1} parent=1 // pred_fallthru
      _
    // Predicated region
    $region14: #{tpu_custom_call.1} parent=1 // pred_check
      _
    $region15: #{tpu_custom_call.1} parent=1 // pred_check_branch
      %43 = sbr.rel (0) target = $region17
    $region16: #{tpu_custom_call.1} parent=1 // pred_region
      %44 = dma.done [#allocation4], 128
    $region17: #{tpu_custom_call.1} parent=1 // pred_fallthru
      _
    %45 = vsyncpa [#allocation3], 1
    %46 = vsyncpa [#allocation4], 1

</llo_original>
